<compile_context>
chip_gen: v7x
topology: tpu7x:2x2x1
jax: 0.10.0
libtpu: 0.0.40
codegen_flags: <defaults>
</compile_context>

<pallas_src>
from functools import partial

import jax
import jax.numpy as jnp
from jax.experimental import pallas as pl
from jax.experimental.pallas import tpu as pltpu


def _round_up(x, m):
    return ((x + m - 1) // m) * m


# ----------------------------------------------------------------------------
# Pallas kernel
# ----------------------------------------------------------------------------
def _ren_kernel(n, l_pad, dim_in, dim_out, lb, nb, offs,
                xu_ref, slab_ref, out_ref, w_ref):
    """xu_ref: (n+dim_in, bb) = [x ; u]^T, slab_ref: packed weights,
    out_ref: (dim_out+n, bb) = [y ; x_new]^T, w_ref: (l_pad, bb) scratch."""
    o_wv, o_d11, o_dd, o_wxu, o_ww = offs
    f32 = jnp.float32

    xu = xu_ref[...]                              # (n+dim_in, bb)
    w_ref[...] = jnp.zeros_like(w_ref)            # future rows must be zero

    def block(r0):
        # Row-block of the (1/Lambda)-scaled implicit-layer weights.
        wv_blk = slab_ref[pl.ds(o_wv + r0, lb), pl.ds(0, n + dim_in)]   # (lb, n+dim_in)
        d11_blk = slab_ref[pl.ds(o_d11 + r0, lb), pl.ds(0, l_pad)]      # (lb, l_pad)
        dd_blk = slab_ref[pl.ds(o_dd + r0, lb), pl.ds(0, lb)]           # (lb, lb)

        # Base term + cross-block coupling in one shot on the MXU.  Rows of
        # w_ref >= r0 are still zero, so the full-width dot is exact.
        v = (jnp.dot(wv_blk, xu, preferred_element_type=f32)
             + jnp.dot(d11_blk, w_ref[...], preferred_element_type=f32))  # (lb, bb)

        # Serial within-block forward substitution (rank-1 push-forward).
        # dd_blk is strictly lower triangular, so the column update only
        # touches rows > p; rows already consumed stay untouched.
        for p in range(lb):
            t = jnp.tanh(v[p:p + 1, :])                                   # (1, bb)
            w_ref[pl.ds(r0 + p, 1), :] = t
            if p + 1 < lb:
                v = v + dd_blk[:, p:p + 1] * t

    if nb <= 4:
        for kb in range(nb):
            block(kb * lb)
    else:
        def body(kb, carry):
            block(pl.multiple_of(kb * lb, lb))
            return carry
        jax.lax.fori_loop(0, nb, body, 0)

    # Combined read-out + state update: two accumulating MXU dots, no concat.
    w_xu = slab_ref[pl.ds(o_wxu, dim_out + n), pl.ds(0, n + dim_in)]
    w_w = slab_ref[pl.ds(o_ww, dim_out + n), pl.ds(0, l_pad)]
    out_ref[...] = (jnp.dot(w_xu, xu, preferred_element_type=f32)
                    + jnp.dot(w_w, w_ref[...], preferred_element_type=f32))


# ----------------------------------------------------------------------------
# Host-side parameter packing (done once per parameter update in practice).
# ----------------------------------------------------------------------------
def pack_params(params, dim_in, dim_out, n, l, lb=8):
    f32 = jnp.float32
    C1 = params["C1"].astype(f32)        # (l, n)
    D11 = params["D11"].astype(f32)      # (l, l), strictly lower triangular
    D12 = params["D12"].astype(f32)      # (l, dim_in)
    lam = params["Lambda"].reshape(l, 1).astype(f32)
    E = params["E"].astype(f32)
    F = params["F"].astype(f32)
    B1 = params["B1"].astype(f32)
    B2 = params["B2"].astype(f32)
    C2 = params["C2"].astype(f32)
    D21 = params["D21"].astype(f32)
    D22 = params["D22"].astype(f32)

    inv_lam = 1.0 / lam                                    # (l, 1), Lambda > 0 by construction
    l_pad = _round_up(l, lb)
    nb = l_pad // lb

    # Implicit-layer weights with 1/Lambda folded in (row scaling).
    WvT = jnp.concatenate([C1, D12], axis=1) * inv_lam     # (l, n+dim_in)
    D11s = D11 * inv_lam                                   # (l, l)
    WvT = jnp.pad(WvT, ((0, l_pad - l), (0, 0)))
    D11s = jnp.pad(D11s, ((0, l_pad - l), (0, l_pad - l)))

    # Stacked diagonal lb x lb blocks of D11s (within-block coupling), so the
    # kernel never needs lane-dynamic slicing.
    Ddiag = jnp.concatenate(
        [D11s[k * lb:(k + 1) * lb, k * lb:(k + 1) * lb] for k in range(nb)],
        axis=0)                                            # (l_pad, lb)

    # Fold E^{-1} into the state/output read-out via a solve (better
    # conditioned than an explicit inverse), transposed layout.
    EiF = jnp.linalg.solve(E, F)                           # (n, n)
    EiB1 = jnp.linalg.solve(E, B1)                         # (n, l)
    EiB2 = jnp.linalg.solve(E, B2)                         # (n, dim_in)
    # rows = [y ; x_new], cols = [x | u]  and  [w]
    W_xu = jnp.concatenate(
        [jnp.concatenate([C2 @ EiF, C2 @ EiB2 + D22], axis=1),
         jnp.concatenate([EiF, EiB2], axis=1)], axis=0)    # (dim_out+n, n+dim_in)
    W_w = jnp.concatenate([C2 @ EiB1 + D21, EiB1], axis=0)  # (dim_out+n, l)
    W_w = jnp.pad(W_w, ((0, 0), (0, l_pad - l)))           # (dim_out+n, l_pad)

    # Pack everything into one slab: rows padded to sublane multiples so all
    # segment offsets are 8-aligned, common lane width.
    Lpad = max(n + dim_in, l_pad, lb)
    segs = (WvT, D11s, Ddiag, W_xu, W_w)
    padded, offs, o = [], [], 0
    for a in segs:
        r = _round_up(a.shape[0], 8)
        padded.append(jnp.pad(a, ((0, r - a.shape[0]), (0, Lpad - a.shape[1]))))
        offs.append(o)
        o += r
    slab = jnp.concatenate(padded, axis=0)                 # (R, Lpad)
    return slab, tuple(offs), l_pad, nb


# ----------------------------------------------------------------------------
# Wrapper
# ----------------------------------------------------------------------------
def acyclic_ren_forward(u_in, x0, params, lb=8):
    """u_in: (batch, 1, dim_in); x0: (1, dim_internal) or (batch, dim_internal).

    Returns (y: (batch, 1, dim_out), x_new: (batch, dim_internal)).
    """
    B = u_in.shape[0]
    dim_in = u_in.shape[-1]
    n = x0.shape[-1]
    l = params["C1"].shape[0]
    dim_out = params["C2"].shape[0]

    slab, offs, l_pad, nb = pack_params(params, dim_in, dim_out, n, l, lb=lb)
    R, Lpad = slab.shape

    # Pre-concatenate [x | u] on the host and transpose so batch sits on lanes.
    u2d = u_in.reshape(B, dim_in).astype(jnp.float32)
    x0_b = jnp.broadcast_to(x0.reshape(-1, n).astype(jnp.float32), (B, n))
    xuT = jnp.concatenate([x0_b, u2d], axis=-1).T          # (n+dim_in, B)

    # Batch (lane) tiling: single full-width tile for small B; otherwise
    # lane-aligned tiles with >= 2 grid steps so the "parallel" axis can shard
    # across v7x's two TensorCores (capped to keep tiles large on v5e/v6e).
    if B <= 128:
        bb, B_pad = B, B
    else:
        bb = min(512, _round_up((B + 1) // 2, 128))
        B_pad = _round_up(B, bb)
    if B_pad != B:
        xuT = jnp.pad(xuT, ((0, 0), (0, B_pad - B)))       # zero pad -> tanh(0)=0, no NaNs
    grid_b = B_pad // bb

    kernel = partial(_ren_kernel, n, l_pad, dim_in, dim_out, lb, nb, offs)

    # TODO(synk): for rolled-out RENs, add an "arbitrary" time grid axis, carry
    # x in VMEM scratch across steps and keep the weight slab resident (constant
    # index_map) instead of re-issuing a pallas_call per time step.
    outT = pl.pallas_call(
        kernel,
        grid=(grid_b,),
        in_specs=[
            pl.BlockSpec((n + dim_in, bb), lambda i: (0, i)),
            pl.BlockSpec((R, Lpad), lambda i: (0, 0)),
        ],
        out_specs=pl.BlockSpec((dim_out + n, bb), lambda i: (0, i)),
        out_shape=jax.ShapeDtypeStruct((dim_out + n, B_pad), jnp.float32),
        scratch_shapes=[pltpu.VMEM((l_pad, bb), jnp.float32)],
        compiler_params=pltpu.CompilerParams(
            dimension_semantics=("parallel",)),
    )(xuT, slab)

    out = outT[:, :B].T                                    # (B, dim_out+n)
    y = out[:, :dim_out].reshape(B, 1, dim_out)
    x_new = out[:, dim_out:]
    return y, x_new


# ----------------------------------------------------------------------------
# Parameter construction (mirrors AcyclicREN.__init__ + update_model_param).
# ----------------------------------------------------------------------------
def make_params(key, dim_in, dim_out, dim_internal, l,
                initialization_std=0.5, posdef_tol=1e-3, contraction_rate_lb=1.0):
    n = dim_internal
    ks = jax.random.split(key, 7)
    X = jax.random.normal(ks[0], (2 * n + l, 2 * n + l), jnp.float32) * initialization_std
    Y = jax.random.normal(ks[1], (n, n), jnp.float32) * initialization_std
    B2 = jax.random.normal(ks[2], (n, dim_in), jnp.float32) * initialization_std
    C2 = jax.random.normal(ks[3], (dim_out, n), jnp.float32) * initialization_std
    D21 = jax.random.normal(ks[4], (dim_out, l), jnp.float32) * initialization_std
    D22 = jax.random.normal(ks[5], (dim_out, dim_in), jnp.float32) * initialization_std
    D12 = jax.random.normal(ks[6], (l, dim_in), jnp.float32) * initialization_std

    H = X.T @ X + posdef_tol * jnp.eye(2 * n + l, dtype=jnp.float32)
    H11 = H[:n, :n]
    H21 = H[n:n + l, :n]
    H22 = H[n:n + l, n:n + l]
    H31 = H[n + l:, :n]
    H32 = H[n + l:, n:n + l]
    H33 = H[n + l:, n + l:]

    P = H33
    F = H31
    B1 = H32
    E = 0.5 * (H11 + contraction_rate_lb * P + Y - Y.T)
    Lambda = 0.5 * jnp.diag(H22)
    D11 = -jnp.tril(H22, k=-1)
    C1 = -H21
    # TODO(synk): E.inverse() has no in-kernel Pallas equivalent; it is a
    # derived (non-trainable) parameter, so it is handled in plain JAX at pack
    # time (as a solve) and folded into the packed state/output weights.
    Einv = jnp.linalg.inv(E)

    return dict(F=F, B1=B1, B2=B2, C1=C1, D11=D11, D12=D12,
                C2=C2, D21=D21, D22=D22, E=E, Einv=Einv, Lambda=Lambda)


# ----------------------------------------------------------------------------
# Pure-JAX reference (mirrors AcyclicREN.forward) for validation.
# ----------------------------------------------------------------------------
def ref_forward(u_in, x0, params):
    B = u_in.shape[0]
    l = params["C1"].shape[0]
    u = u_in[:, 0, :]                     # (B, dim_in)
    x = x0                                # (1, n)
    w = jnp.zeros((B, l), jnp.float32)
    for i in range(l):
        v = (x @ params["C1"][i, :] + w @ params["D11"][i, :]
             + u @ params["D12"][i, :])[:, None]          # (B, 1)
        w = w + jnp.where(jnp.arange(l)[None, :] == i,
                          jnp.tanh(v / params["Lambda"][i]), 0.0)
    xpre = x @ params["F"].T + w @ params["B1"].T + u @ params["B2"].T
    x_new = xpre @ params["Einv"].T
    y = x_new @ params["C2"].T + w @ params["D21"].T + u @ params["D22"].T
    return y[:, None, :], x_new


if __name__ == "__main__":
    dim_in, dim_out, dim_internal, l, batch = 4, 3, 8, 8, 2

    key = jax.random.PRNGKey(0)
    pkey, ukey = jax.random.split(key)
    params = make_params(pkey, dim_in, dim_out, dim_internal, l)

    u_in = jax.random.normal(ukey, (batch, 1, dim_in), jnp.float32)
    x0 = jnp.zeros((1, dim_internal), jnp.float32)   # default internal_state_init

    y, x_new = acyclic_ren_forward(u_in, x0, params)
    jax.block_until_ready((y, x_new))

    y_ref, x_ref = ref_forward(u_in, x0, params)
    assert y.shape == (batch, 1, dim_out)
    assert x_new.shape == (batch, dim_internal)
    assert jnp.allclose(y, y_ref, atol=1e-3, rtol=1e-3), (y, y_ref)
    assert jnp.allclose(x_new, x_ref, atol=1e-3, rtol=1e-3), (x_new, x_ref)

    print("KERNEL_OK")
</pallas_src>

<mosaic_0001>
module attributes {stable_mosaic.version = 11 : i64} {
  func.func @_ren_kernel(%arg0: i32, %arg1: memref<12x2xf32, #tpu.memory_space<vmem>>, %arg2: memref<56x12xf32, #tpu.memory_space<vmem>>, %arg3: memref<11x2xf32, #tpu.memory_space<vmem>>, %arg4: memref<8x2xf32, #tpu.memory_space<vmem>>) attributes {dimension_semantics = [#tpu.dimension_semantics<parallel>], iteration_bounds = array<i64: 1>, scalar_prefetch = 0 : i64, scratch_operands = 1 : i64, tpu.core_type = #tpu.core_type<tc>, window_params = [{transform_indices = @transform_0, window_bounds = array<i64: 12, 2>}, {pipeline_mode = #tpu.pipeline_mode<synchronous>, transform_indices = @transform_1, window_bounds = array<i64: 56, 12>}, {transform_indices = @transform_2, window_bounds = array<i64: 11, 2>}]} {
    %c0 = arith.constant 0 : index
    %c0_0 = arith.constant 0 : index
    %0 = vector.load %arg1[%c0, %c0_0] : memref<12x2xf32, #tpu.memory_space<vmem>>, vector<12x2xf32>
    %cst = arith.constant 0.000000e+00 : f32
    %1 = vector.broadcast %cst : f32 to vector<8x2xf32>
    %c0_1 = arith.constant 0 : index
    %c0_2 = arith.constant 0 : index
    %2 = vector.load %arg4[%c0_1, %c0_2] : memref<8x2xf32, #tpu.memory_space<vmem>>, vector<8x2xf32>
    tpu.vector_store %arg4[%c0_1, %c0_2], %1 {strides = array<i32>} : memref<8x2xf32, #tpu.memory_space<vmem>>, vector<8x2xf32>,
    %c0_3 = arith.constant 0 : index
    %c0_4 = arith.constant 0 : index
    %3 = vector.load %arg2[%c0_3, %c0_4] : memref<56x12xf32, #tpu.memory_space<vmem>>, vector<8x12xf32>
    %c8 = arith.constant 8 : index
    %c0_5 = arith.constant 0 : index
    %4 = vector.load %arg2[%c8, %c0_5] : memref<56x12xf32, #tpu.memory_space<vmem>>, vector<8x8xf32>
    %c16 = arith.constant 16 : index
    %c0_6 = arith.constant 0 : index
    %5 = vector.load %arg2[%c16, %c0_6] : memref<56x12xf32, #tpu.memory_space<vmem>>, vector<8x8xf32>
    %cst_7 = arith.constant dense<0.000000e+00> : vector<8x2xf32>
    %6 = tpu.matmul %3, %0, %cst_7 {dimension_numbers = #tpu.dot_dimension_numbers<[1], [0], [0], [1], [0, 0, 1, 1], [], []>} : vector<8x12xf32>, vector<12x2xf32>, vector<8x2xf32> -> vector<8x2xf32>
    %c0_8 = arith.constant 0 : index
    %c0_9 = arith.constant 0 : index
    %7 = vector.load %arg4[%c0_8, %c0_9] : memref<8x2xf32, #tpu.memory_space<vmem>>, vector<8x2xf32>
    %cst_10 = arith.constant dense<0.000000e+00> : vector<8x2xf32>
    %8 = tpu.matmul %4, %7, %cst_10 {dimension_numbers = #tpu.dot_dimension_numbers<[1], [0], [0], [1], [0, 0, 1, 1], [], []>} : vector<8x8xf32>, vector<8x2xf32>, vector<8x2xf32> -> vector<8x2xf32>
    %9 = arith.addf %6, %8 : vector<8x2xf32>
    %10 = vector.extract_strided_slice %9 {offsets = [0, 0], sizes = [1, 2], strides = [1, 1]} : vector<8x2xf32> to vector<1x2xf32>
    %11 = math.tanh %10 : vector<1x2xf32>
    %c0_11 = arith.constant 0 : index
    %c0_12 = arith.constant 0 : index
    %12 = vector.load %arg4[%c0_11, %c0_12] : memref<8x2xf32, #tpu.memory_space<vmem>>, vector<1x2xf32>
    tpu.vector_store %arg4[%c0_11, %c0_12], %11 {strides = array<i32>} : memref<8x2xf32, #tpu.memory_space<vmem>>, vector<1x2xf32>,
    %13 = vector.extract_strided_slice %5 {offsets = [0, 0], sizes = [8, 1], strides = [1, 1]} : vector<8x8xf32> to vector<8x1xf32>
    %14 = vector.broadcast %13 : vector<8x1xf32> to vector<8x2xf32>
    %15 = vector.broadcast %11 : vector<1x2xf32> to vector<8x2xf32>
    %16 = arith.mulf %14, %15 : vector<8x2xf32>
    %17 = arith.addf %9, %16 : vector<8x2xf32>
    %18 = vector.extract_strided_slice %17 {offsets = [1, 0], sizes = [1, 2], strides = [1, 1]} : vector<8x2xf32> to vector<1x2xf32>
    %19 = math.tanh %18 : vector<1x2xf32>
    %c1 = arith.constant 1 : index
    %c0_13 = arith.constant 0 : index
    %20 = vector.load %arg4[%c1, %c0_13] : memref<8x2xf32, #tpu.memory_space<vmem>>, vector<1x2xf32>
    tpu.vector_store %arg4[%c1, %c0_13], %19 {strides = array<i32>} : memref<8x2xf32, #tpu.memory_space<vmem>>, vector<1x2xf32>,
    %21 = vector.extract_strided_slice %5 {offsets = [0, 1], sizes = [8, 1], strides = [1, 1]} : vector<8x8xf32> to vector<8x1xf32>
    %22 = vector.broadcast %21 : vector<8x1xf32> to vector<8x2xf32>
    %23 = vector.broadcast %19 : vector<1x2xf32> to vector<8x2xf32>
    %24 = arith.mulf %22, %23 : vector<8x2xf32>
    %25 = arith.addf %17, %24 : vector<8x2xf32>
    %26 = vector.extract_strided_slice %25 {offsets = [2, 0], sizes = [1, 2], strides = [1, 1]} : vector<8x2xf32> to vector<1x2xf32>
    %27 = math.tanh %26 : vector<1x2xf32>
    %c2 = arith.constant 2 : index
    %c0_14 = arith.constant 0 : index
    %28 = vector.load %arg4[%c2, %c0_14] : memref<8x2xf32, #tpu.memory_space<vmem>>, vector<1x2xf32>
    tpu.vector_store %arg4[%c2, %c0_14], %27 {strides = array<i32>} : memref<8x2xf32, #tpu.memory_space<vmem>>, vector<1x2xf32>,
    %29 = vector.extract_strided_slice %5 {offsets = [0, 2], sizes = [8, 1], strides = [1, 1]} : vector<8x8xf32> to vector<8x1xf32>
    %30 = vector.broadcast %29 : vector<8x1xf32> to vector<8x2xf32>
    %31 = vector.broadcast %27 : vector<1x2xf32> to vector<8x2xf32>
    %32 = arith.mulf %30, %31 : vector<8x2xf32>
    %33 = arith.addf %25, %32 : vector<8x2xf32>
    %34 = vector.extract_strided_slice %33 {offsets = [3, 0], sizes = [1, 2], strides = [1, 1]} : vector<8x2xf32> to vector<1x2xf32>
    %35 = math.tanh %34 : vector<1x2xf32>
    %c3 = arith.constant 3 : index
    %c0_15 = arith.constant 0 : index
    %36 = vector.load %arg4[%c3, %c0_15] : memref<8x2xf32, #tpu.memory_space<vmem>>, vector<1x2xf32>
    tpu.vector_store %arg4[%c3, %c0_15], %35 {strides = array<i32>} : memref<8x2xf32, #tpu.memory_space<vmem>>, vector<1x2xf32>,
    %37 = vector.extract_strided_slice %5 {offsets = [0, 3], sizes = [8, 1], strides = [1, 1]} : vector<8x8xf32> to vector<8x1xf32>
    %38 = vector.broadcast %37 : vector<8x1xf32> to vector<8x2xf32>
    %39 = vector.broadcast %35 : vector<1x2xf32> to vector<8x2xf32>
    %40 = arith.mulf %38, %39 : vector<8x2xf32>
    %41 = arith.addf %33, %40 : vector<8x2xf32>
    %42 = vector.extract_strided_slice %41 {offsets = [4, 0], sizes = [1, 2], strides = [1, 1]} : vector<8x2xf32> to vector<1x2xf32>
    %43 = math.tanh %42 : vector<1x2xf32>
    %c4 = arith.constant 4 : index
    %c0_16 = arith.constant 0 : index
    %44 = vector.load %arg4[%c4, %c0_16] : memref<8x2xf32, #tpu.memory_space<vmem>>, vector<1x2xf32>
    tpu.vector_store %arg4[%c4, %c0_16], %43 {strides = array<i32>} : memref<8x2xf32, #tpu.memory_space<vmem>>, vector<1x2xf32>,
    %45 = vector.extract_strided_slice %5 {offsets = [0, 4], sizes = [8, 1], strides = [1, 1]} : vector<8x8xf32> to vector<8x1xf32>
    %46 = vector.broadcast %45 : vector<8x1xf32> to vector<8x2xf32>
    %47 = vector.broadcast %43 : vector<1x2xf32> to vector<8x2xf32>
    %48 = arith.mulf %46, %47 : vector<8x2xf32>
    %49 = arith.addf %41, %48 : vector<8x2xf32>
    %50 = vector.extract_strided_slice %49 {offsets = [5, 0], sizes = [1, 2], strides = [1, 1]} : vector<8x2xf32> to vector<1x2xf32>
    %51 = math.tanh %50 : vector<1x2xf32>
    %c5 = arith.constant 5 : index
    %c0_17 = arith.constant 0 : index
    %52 = vector.load %arg4[%c5, %c0_17] : memref<8x2xf32, #tpu.memory_space<vmem>>, vector<1x2xf32>
    tpu.vector_store %arg4[%c5, %c0_17], %51 {strides = array<i32>} : memref<8x2xf32, #tpu.memory_space<vmem>>, vector<1x2xf32>,
    %53 = vector.extract_strided_slice %5 {offsets = [0, 5], sizes = [8, 1], strides = [1, 1]} : vector<8x8xf32> to vector<8x1xf32>
    %54 = vector.broadcast %53 : vector<8x1xf32> to vector<8x2xf32>
    %55 = vector.broadcast %51 : vector<1x2xf32> to vector<8x2xf32>
    %56 = arith.mulf %54, %55 : vector<8x2xf32>
    %57 = arith.addf %49, %56 : vector<8x2xf32>
    %58 = vector.extract_strided_slice %57 {offsets = [6, 0], sizes = [1, 2], strides = [1, 1]} : vector<8x2xf32> to vector<1x2xf32>
    %59 = math.tanh %58 : vector<1x2xf32>
    %c6 = arith.constant 6 : index
    %c0_18 = arith.constant 0 : index
    %60 = vector.load %arg4[%c6, %c0_18] : memref<8x2xf32, #tpu.memory_space<vmem>>, vector<1x2xf32>
    tpu.vector_store %arg4[%c6, %c0_18], %59 {strides = array<i32>} : memref<8x2xf32, #tpu.memory_space<vmem>>, vector<1x2xf32>,
    %61 = vector.extract_strided_slice %5 {offsets = [0, 6], sizes = [8, 1], strides = [1, 1]} : vector<8x8xf32> to vector<8x1xf32>
    %62 = vector.broadcast %61 : vector<8x1xf32> to vector<8x2xf32>
    %63 = vector.broadcast %59 : vector<1x2xf32> to vector<8x2xf32>
    %64 = arith.mulf %62, %63 : vector<8x2xf32>
    %65 = arith.addf %57, %64 : vector<8x2xf32>
    %66 = vector.extract_strided_slice %65 {offsets = [7, 0], sizes = [1, 2], strides = [1, 1]} : vector<8x2xf32> to vector<1x2xf32>
    %67 = math.tanh %66 : vector<1x2xf32>
    %c7 = arith.constant 7 : index
    %c0_19 = arith.constant 0 : index
    %68 = vector.load %arg4[%c7, %c0_19] : memref<8x2xf32, #tpu.memory_space<vmem>>, vector<1x2xf32>
    tpu.vector_store %arg4[%c7, %c0_19], %67 {strides = array<i32>} : memref<8x2xf32, #tpu.memory_space<vmem>>, vector<1x2xf32>,
    %c24 = arith.constant 24 : index
    %c0_20 = arith.constant 0 : index
    %69 = vector.load %arg2[%c24, %c0_20] : memref<56x12xf32, #tpu.memory_space<vmem>>, vector<11x12xf32>
    %c40 = arith.constant 40 : index
    %c0_21 = arith.constant 0 : index
    %70 = vector.load %arg2[%c40, %c0_21] : memref<56x12xf32, #tpu.memory_space<vmem>>, vector<11x8xf32>
    %cst_22 = arith.constant dense<0.000000e+00> : vector<11x2xf32>
    %71 = tpu.matmul %69, %0, %cst_22 {dimension_numbers = #tpu.dot_dimension_numbers<[1], [0], [0], [1], [0, 0, 1, 1], [], []>} : vector<11x12xf32>, vector<12x2xf32>, vector<11x2xf32> -> vector<11x2xf32>
    %c0_23 = arith.constant 0 : index
    %c0_24 = arith.constant 0 : index
    %72 = vector.load %arg4[%c0_23, %c0_24] : memref<8x2xf32, #tpu.memory_space<vmem>>, vector<8x2xf32>
    %cst_25 = arith.constant dense<0.000000e+00> : vector<11x2xf32>
    %73 = tpu.matmul %70, %72, %cst_25 {dimension_numbers = #tpu.dot_dimension_numbers<[1], [0], [0], [1], [0, 0, 1, 1], [], []>} : vector<11x8xf32>, vector<8x2xf32>, vector<11x2xf32> -> vector<11x2xf32>
    %74 = arith.addf %71, %73 : vector<11x2xf32>
    %c0_26 = arith.constant 0 : index
    %c0_27 = arith.constant 0 : index
    %75 = vector.load %arg3[%c0_26, %c0_27] : memref<11x2xf32, #tpu.memory_space<vmem>>, vector<11x2xf32>
    tpu.vector_store %arg3[%c0_26, %c0_27], %74 {strides = array<i32>} : memref<11x2xf32, #tpu.memory_space<vmem>>, vector<11x2xf32>,
    return
  }
  func.func @transform_0(%arg0: i32) -> (i32, i32) {
    %c0_i32 = arith.constant 0 : i32
    %c0_i32_0 = arith.constant 0 : i32
    return %c0_i32, %arg0 : i32, i32
  }
  func.func @transform_1(%arg0: i32) -> (i32, i32) {
    %c0_i32 = arith.constant 0 : i32
    %c0_i32_0 = arith.constant 0 : i32
    %c0_i32_1 = arith.constant 0 : i32
    return %c0_i32, %c0_i32_0 : i32, i32
  }
  func.func @transform_2(%arg0: i32) -> (i32, i32) {
    %c0_i32 = arith.constant 0 : i32
    %c0_i32_0 = arith.constant 0 : i32
    return %c0_i32, %arg0 : i32, i32
  }
}

</mosaic_0001>

<llo_original>
// kernel: tpu_custom_call.1
$region0: #{tpu_custom_call.1}
  #allocation0 [shape = 'u32[]', space=smem, size = 0x4, offset = 0x4, fixed_abs, tag = 'smem constant byte address 0x4 - core index']
  #allocation1 [shape = 'u32[144,128]{1,0:T(1,128)}', space=vmem, size = 0x12000, scoped, tag = 'internal scratch']
  #allocation2 [shape = 'f32[8,2]{1,0:T(8,128)}', space=vmem, size = 0x1000, scoped, tag = 'scratch operand']
  %s0 = inlined_call_operand.vmem [shape: f32[12,2], index: 0, kind: input, shape index: {}]
  %s1 = inlined_call_operand.vmem [shape: f32[56,12], index: 1, kind: input, shape index: {}]
  %s2 = inlined_call_operand.vmem [shape: f32[11,2], index: 2, kind: output, shape index: {}]
  %s3 = sld [smem:[#allocation0]]
  $region18: #{tpu_custom_call.1} parent=0
    _
  %s5 = ssub.s32 1, %s3
  %s6 = scalar_select 0, %s5, %s3
  // Predicated region
  $region2: #{tpu_custom_call.1} parent=0 // pred_check
    _
  $region3: #{tpu_custom_call.1} parent=0 // pred_check_branch
    %8 = sbr.rel (0) target = $region5
  $region4: #{tpu_custom_call.1} parent=0 // pred_region
    _
  $region5: #{tpu_custom_call.1} parent=0 // pred_fallthru
    _
  // Predicated region
  $region6: #{tpu_custom_call.1} parent=0 // pred_check
    _
  $region7: #{tpu_custom_call.1} parent=0 // pred_check_branch
    %10 = sbr.rel (0) target = $region9
  $region8: #{tpu_custom_call.1} parent=0 // pred_region
    _
  $region9: #{tpu_custom_call.1} parent=0 // pred_fallthru
    _
  %v11 = vld [vmem:[%s0] sm:$0xff]
  %v12 = vld [vmem:[%s0 + $0x8] sm:$0xf]
  %vm13 = vcmask 15360
  %14 = vst.msk [vmem:[#allocation2] sm:$0xff] %vm13, 0.0
  %v15 = vld [vmem:[%s1] sm:$0xff]
  %v16 = vld [vmem:[%s1 + $0x8] sm:$0xff]
  %v17 = vld [vmem:[%s1 + $0x10] sm:$0xff]
  %v18 = vld [vmem:[#allocation2] sm:$0xff]
  %vm19 = vcmask 64512
  %v21 = vsel %vm19, %v16, 0
  %23 = vmatprep.subr.mxu0 0.0
  %24 = vmatpush1.msra.mxu0 %v18
  %25 = vmatprep.subr.mxu0 0.0
  %26 = vmatpush1.msra.mxu0 0.0
  %27 = vmatprep.subr.mxu0 0.0
  %28 = vmatpush1.msra.mxu0 0.0
  %29 = vmatprep.subr.mxu0 0.0
  %30 = vmatpush1.msra.mxu0 0.0
  %31 = vmatprep.subr.mxu0 0.0
  %32 = vmatpush1.msra.mxu0 0.0
  %33 = vmatprep.subr.mxu0 0.0
  %34 = vmatpush1.msra.mxu0 0.0
  %35 = vmatprep.subr.mxu0 0.0
  %36 = vmatpush1.msra.mxu0 0.0
  %37 = vmatprep.subr.mxu0 0.0
  %38 = vmatpush1.msra.mxu0 0.0
  %39 = vmatprep.subr.mxu0 0.0
  %40 = vmatpush1.msra.mxu0 0.0
  %41 = vmatprep.subr.mxu0 0.0
  %42 = vmatpush1.msra.mxu0 0.0
  %43 = vmatprep.subr.mxu0 0.0
  %44 = vmatpush1.msra.mxu0 0.0
  %45 = vmatprep.subr.mxu0 0.0
  %46 = vmatpush1.msra.mxu0 0.0
  %47 = vmatprep.subr.mxu0 0.0
  %48 = vmatpush1.msra.mxu0 0.0
  %49 = vmatprep.subr.mxu0 0.0
  %50 = vmatpush1.msra.mxu0 0.0
  %51 = vmatprep.subr.mxu0 0.0
  %52 = vmatpush1.msra.mxu0 0.0
  %53 = vmatprep.subr.mxu0 0.0
  %54 = vmatpush1.msra.mxu0 0.0
  %55 = vmatprep.subr.mxu0 0.0
  %56 = vmatpush1.msra.mxu0 0.0
  %57 = vmatprep.subr.mxu0 0.0
  %58 = vmatpush1.msra.mxu0 0.0
  %59 = vmatprep.subr.mxu0 0.0
  %60 = vmatpush1.msra.mxu0 0.0
  %61 = vmatprep.subr.mxu0 0.0
  %62 = vmatpush1.msra.mxu0 0.0
  %63 = vmatprep.subr.mxu0 0.0
  %64 = vmatpush1.msra.mxu0 0.0
  %65 = vmatprep.subr.mxu0 0.0
  %66 = vmatpush1.msra.mxu0 0.0
  %67 = vmatprep.subr.mxu0 0.0
  %68 = vmatpush1.msra.mxu0 0.0
  %69 = vmatprep.subr.mxu0 0.0
  %70 = vmatpush1.msra.mxu0 0.0
  %71 = vmatprep.subr.mxu0 0.0
  %72 = vmatpush1.msra.mxu0 0.0
  %73 = vmatprep.subr.mxu0 0.0
  %74 = vmatpush1.msra.mxu0 0.0
  %75 = vmatprep.subr.mxu0 0.0
  %76 = vmatpush1.msra.mxu0 0.0
  %77 = vmatprep.subr.mxu0 0.0
  %78 = vmatpush1.msra.mxu0 0.0
  %79 = vmatprep.subr.mxu0 0.0
  %80 = vmatpush1.msra.mxu0 0.0
  %81 = vmatprep.subr.mxu0 0.0
  %82 = vmatpush1.msra.mxu0 0.0
  %83 = vmatprep.subr.mxu0 0.0
  %84 = vmatpush1.msra.mxu0 0.0
  %85 = vmatprep.subr.mxu0 0.0
  %86 = vmatpush1.msra.mxu0 0.0
  %87 = vmatprep.mubr.f32.mxu0 0.0
  %88 = vmatmul.mubr.f32.gmra.mrb[0].mxu0 %v21
  %v89 = vpop.f32.mrb[0].mxu0
  %v90 = vadd.f32 0.0, %v89
  %v91 = vpop.f32.mrb[0].mxu0
  %92 = vdwg.mxu0
  %vm93 = vcmask 97280
  %v95 = vsel %vm93, %v15, 0
  %vm97 = vcmask 1043456
  %v99 = vsel %vm97, %v12, 0
  %101 = vmatprep.subr.mxu0 0.0
  %102 = vmatpush1.msra.mxu0 %v11
  %103 = vmatprep.subr.mxu0 0.0
  %104 = vmatpush1.msra.mxu0 %v99
  %105 = vmatprep.subr.mxu0 0.0
  %106 = vmatpush1.msra.mxu0 0.0
  %107 = vmatprep.subr.mxu0 0.0
  %108 = vmatpush1.msra.mxu0 0.0
  %109 = vmatprep.subr.mxu0 0.0
  %110 = vmatpush1.msra.mxu0 0.0
  %111 = vmatprep.subr.mxu0 0.0
  %112 = vmatpush1.msra.mxu0 0.0
  %113 = vmatprep.subr.mxu0 0.0
  %114 = vmatpush1.msra.mxu0 0.0
  %115 = vmatprep.subr.mxu0 0.0
  %116 = vmatpush1.msra.mxu0 0.0
  %117 = vmatprep.subr.mxu0 0.0
  %118 = vmatpush1.msra.mxu0 0.0
  %119 = vmatprep.subr.mxu0 0.0
  %120 = vmatpush1.msra.mxu0 0.0
  %121 = vmatprep.subr.mxu0 0.0
  %122 = vmatpush1.msra.mxu0 0.0
  %123 = vmatprep.subr.mxu0 0.0
  %124 = vmatpush1.msra.mxu0 0.0
  %125 = vmatprep.subr.mxu0 0.0
  %126 = vmatpush1.msra.mxu0 0.0
  %127 = vmatprep.subr.mxu0 0.0
  %128 = vmatpush1.msra.mxu0 0.0
  %129 = vmatprep.subr.mxu0 0.0
  %130 = vmatpush1.msra.mxu0 0.0
  %131 = vmatprep.subr.mxu0 0.0
  %132 = vmatpush1.msra.mxu0 0.0
  %133 = vmatprep.subr.mxu0 0.0
  %134 = vmatpush1.msra.mxu0 0.0
  %135 = vmatprep.subr.mxu0 0.0
  %136 = vmatpush1.msra.mxu0 0.0
  %137 = vmatprep.subr.mxu0 0.0
  %138 = vmatpush1.msra.mxu0 0.0
  %139 = vmatprep.subr.mxu0 0.0
  %140 = vmatpush1.msra.mxu0 0.0
  %141 = vmatprep.subr.mxu0 0.0
  %142 = vmatpush1.msra.mxu0 0.0
  %143 = vmatprep.subr.mxu0 0.0
  %144 = vmatpush1.msra.mxu0 0.0
  %145 = vmatprep.subr.mxu0 0.0
  %146 = vmatpush1.msra.mxu0 0.0
  %147 = vmatprep.subr.mxu0 0.0
  %148 = vmatpush1.msra.mxu0 0.0
  %149 = vmatprep.subr.mxu0 0.0
  %150 = vmatpush1.msra.mxu0 0.0
  %151 = vmatprep.subr.mxu0 0.0
  %152 = vmatpush1.msra.mxu0 0.0
  %153 = vmatprep.subr.mxu0 0.0
  %154 = vmatpush1.msra.mxu0 0.0
  %155 = vmatprep.subr.mxu0 0.0
  %156 = vmatpush1.msra.mxu0 0.0
  %157 = vmatprep.subr.mxu0 0.0
  %158 = vmatpush1.msra.mxu0 0.0
  %159 = vmatprep.subr.mxu0 0.0
  %160 = vmatpush1.msra.mxu0 0.0
  %161 = vmatprep.subr.mxu0 0.0
  %162 = vmatpush1.msra.mxu0 0.0
  %163 = vmatprep.subr.mxu0 0.0
  %164 = vmatpush1.msra.mxu0 0.0
  %165 = vmatprep.mubr.f32.mxu0 0.0
  %166 = vmatmul.mubr.f32.gmra.mrb[0].mxu0 %v95
  %v167 = vpop.f32.mrb[0].mxu0
  %v168 = vadd.f32 %v90, %v167
  %v169 = vpop.f32.mrb[0].mxu0
  %170 = vdwg.mxu0
  %v171 = vtanh.pop %v168
  %vm172 = vcmask 8192
  %173 = vst.msk [vmem:[#allocation2] sm:$0x1] %vm172, %v171
  %175 = vset.pattern.permute.xlu0 0
  %176 = vperm.xlu0 %175, %v17
  %v177 = vpop.permute.xlu0 %176
  %v179 = vlaneseq
  %v180 = vshrl.u32 %v179, 7
  %v181 = vsub.s32 0, %v180
  %v182 = vrot.slane %v171, %v181
  %v183 = vmul.f32 %v177, %v182
  %v184 = vadd.f32 %v168, %v183
  %v185 = vtanh.pop %v184
  %vm186 = vcmask 9217
  %187 = vst.msk [vmem:[#allocation2] sm:$0x2] %vm186, %v185
  %188 = vset.pattern.permute.xlu0 1
  %189 = vperm.xlu0 %188, %v17
  %v190 = vpop.permute.xlu0 %189
  %v192 = vlaneseq
  %v193 = vshrl.u32 %v192, 7
  %v194 = vsub.s32 1, %v193
  %v195 = vrot.slane %v185, %v194
  %v196 = vmul.f32 %v190, %v195
  %v197 = vadd.f32 %v184, %v196
  %v198 = vtanh.pop %v197
  %vm199 = vcmask 10242
  %200 = vst.msk [vmem:[#allocation2] sm:$0x4] %vm199, %v198
  %201 = vset.pattern.permute.xlu0 2
  %202 = vperm.xlu0 %201, %v17
  %v203 = vpop.permute.xlu0 %202
  %v205 = vlaneseq
  %v206 = vshrl.u32 %v205, 7
  %v207 = vsub.s32 2, %v206
  %v208 = vrot.slane %v198, %v207
  %v209 = vmul.f32 %v203, %v208
  %v210 = vadd.f32 %v197, %v209
  %v211 = vtanh.pop %v210
  %vm212 = vcmask 11267
  %213 = vst.msk [vmem:[#allocation2] sm:$0x8] %vm212, %v211
  %214 = vset.pattern.permute.xlu0 3
  %215 = vperm.xlu0 %214, %v17
  %v216 = vpop.permute.xlu0 %215
  %v218 = vlaneseq
  %v219 = vshrl.u32 %v218, 7
  %v220 = vsub.s32 3, %v219
  %v221 = vrot.slane %v211, %v220
  %v222 = vmul.f32 %v216, %v221
  %v223 = vadd.f32 %v210, %v222
  %v224 = vtanh.pop %v223
  %vm225 = vcmask 12292
  %226 = vst.msk [vmem:[#allocation2] sm:$0x10] %vm225, %v224
  %227 = vset.pattern.permute.xlu0 4
  %228 = vperm.xlu0 %227, %v17
  %v229 = vpop.permute.xlu0 %228
  %v231 = vlaneseq
  %v232 = vshrl.u32 %v231, 7
  %v233 = vsub.s32 4, %v232
  %v234 = vrot.slane %v224, %v233
  %v235 = vmul.f32 %v229, %v234
  %v236 = vadd.f32 %v223, %v235
  %v237 = vtanh.pop %v236
  %vm238 = vcmask 13317
  %239 = vst.msk [vmem:[#allocation2] sm:$0x20] %vm238, %v237
  %240 = vset.pattern.permute.xlu0 5
  %241 = vperm.xlu0 %240, %v17
  %v242 = vpop.permute.xlu0 %241
  %v244 = vlaneseq
  %v245 = vshrl.u32 %v244, 7
  %v246 = vsub.s32 5, %v245
  %v247 = vrot.slane %v237, %v246
  %v248 = vmul.f32 %v242, %v247
  %v249 = vadd.f32 %v236, %v248
  %v250 = vtanh.pop %v249
  %vm251 = vcmask 14342
  %252 = vst.msk [vmem:[#allocation2] sm:$0x40] %vm251, %v250
  %253 = vset.pattern.permute.xlu0 6
  %254 = vperm.xlu0 %253, %v17
  %v255 = vpop.permute.xlu0 %254
  %v257 = vlaneseq
  %v258 = vshrl.u32 %v257, 7
  %v259 = vsub.s32 6, %v258
  %v260 = vrot.slane %v250, %v259
  %v261 = vmul.f32 %v255, %v260
  %v262 = vadd.f32 %v249, %v261
  %v263 = vtanh.pop %v262
  %vm264 = vcmask 15367
  %265 = vst.msk [vmem:[#allocation2] sm:$0x80] %vm264, %v263
  %v266 = vld [vmem:[%s1 + $0x18] sm:$0xff]
  %v267 = vld [vmem:[%s1 + $0x20] sm:$0x7]
  %v268 = vld [vmem:[%s1 + $0x28] sm:$0xff]
  %v269 = vld [vmem:[%s1 + $0x30] sm:$0x7]
  %v270 = vld [vmem:[#allocation2] sm:$0xff]
  %v272 = vsel %vm19, %v268, 0
  %v275 = vsel %vm19, %v269, 0
  %277 = vmatprep.subr.mxu0 0.0
  %278 = vmatpush1.msra.mxu0 %v270
  %279 = vmatprep.subr.mxu0 0.0
  %280 = vmatpush1.msra.mxu0 0.0
  %281 = vmatprep.subr.mxu0 0.0
  %282 = vmatpush1.msra.mxu0 0.0
  %283 = vmatprep.subr.mxu0 0.0
  %284 = vmatpush1.msra.mxu0 0.0
  %285 = vmatprep.subr.mxu0 0.0
  %286 = vmatpush1.msra.mxu0 0.0
  %287 = vmatprep.subr.mxu0 0.0
  %288 = vmatpush1.msra.mxu0 0.0
  %289 = vmatprep.subr.mxu0 0.0
  %290 = vmatpush1.msra.mxu0 0.0
  %291 = vmatprep.subr.mxu0 0.0
  %292 = vmatpush1.msra.mxu0 0.0
  %293 = vmatprep.subr.mxu0 0.0
  %294 = vmatpush1.msra.mxu0 0.0
  %295 = vmatprep.subr.mxu0 0.0
  %296 = vmatpush1.msra.mxu0 0.0
  %297 = vmatprep.subr.mxu0 0.0
  %298 = vmatpush1.msra.mxu0 0.0
  %299 = vmatprep.subr.mxu0 0.0
  %300 = vmatpush1.msra.mxu0 0.0
  %301 = vmatprep.subr.mxu0 0.0
  %302 = vmatpush1.msra.mxu0 0.0
  %303 = vmatprep.subr.mxu0 0.0
  %304 = vmatpush1.msra.mxu0 0.0
  %305 = vmatprep.subr.mxu0 0.0
  %306 = vmatpush1.msra.mxu0 0.0
  %307 = vmatprep.subr.mxu0 0.0
  %308 = vmatpush1.msra.mxu0 0.0
  %309 = vmatprep.subr.mxu0 0.0
  %310 = vmatpush1.msra.mxu0 0.0
  %311 = vmatprep.subr.mxu0 0.0
  %312 = vmatpush1.msra.mxu0 0.0
  %313 = vmatprep.subr.mxu0 0.0
  %314 = vmatpush1.msra.mxu0 0.0
  %315 = vmatprep.subr.mxu0 0.0
  %316 = vmatpush1.msra.mxu0 0.0
  %317 = vmatprep.subr.mxu0 0.0
  %318 = vmatpush1.msra.mxu0 0.0
  %319 = vmatprep.subr.mxu0 0.0
  %320 = vmatpush1.msra.mxu0 0.0
  %321 = vmatprep.subr.mxu0 0.0
  %322 = vmatpush1.msra.mxu0 0.0
  %323 = vmatprep.subr.mxu0 0.0
  %324 = vmatpush1.msra.mxu0 0.0
  %325 = vmatprep.subr.mxu0 0.0
  %326 = vmatpush1.msra.mxu0 0.0
  %327 = vmatprep.subr.mxu0 0.0
  %328 = vmatpush1.msra.mxu0 0.0
  %329 = vmatprep.subr.mxu0 0.0
  %330 = vmatpush1.msra.mxu0 0.0
  %331 = vmatprep.subr.mxu0 0.0
  %332 = vmatpush1.msra.mxu0 0.0
  %333 = vmatprep.subr.mxu0 0.0
  %334 = vmatpush1.msra.mxu0 0.0
  %335 = vmatprep.subr.mxu0 0.0
  %336 = vmatpush1.msra.mxu0 0.0
  %337 = vmatprep.subr.mxu0 0.0
  %338 = vmatpush1.msra.mxu0 0.0
  %339 = vmatprep.subr.mxu0 0.0
  %340 = vmatpush1.msra.mxu0 0.0
  %341 = vmatprep.mubr.f32.mxu0 0.0
  %342 = vmatmul.mubr.f32.gmra.mrb[0].mxu0 %v272
  %v343 = vpop.f32.mrb[0].mxu0
  %v344 = vadd.f32 0.0, %v343
  %v345 = vpop.f32.mrb[0].mxu0
  %346 = vmatprep.mubr.f32.mxu0 0.0
  %347 = vmatmul.mubr.f32.gmra.mrb[0].mxu0 %v275
  %v348 = vpop.f32.mrb[0].mxu0
  %v349 = vadd.f32 0.0, %v348
  %v350 = vpop.f32.mrb[0].mxu0
  %351 = vdwg.mxu0
  %v353 = vsel %vm93, %v266, 0
  %v356 = vsel %vm93, %v267, 0
  %358 = vmatprep.subr.mxu0 0.0
  %359 = vmatpush1.msra.mxu0 %v11
  %360 = vmatprep.subr.mxu0 0.0
  %361 = vmatpush1.msra.mxu0 %v99
  %362 = vmatprep.subr.mxu0 0.0
  %363 = vmatpush1.msra.mxu0 0.0
  %364 = vmatprep.subr.mxu0 0.0
  %365 = vmatpush1.msra.mxu0 0.0
  %366 = vmatprep.subr.mxu0 0.0
  %367 = vmatpush1.msra.mxu0 0.0
  %368 = vmatprep.subr.mxu0 0.0
  %369 = vmatpush1.msra.mxu0 0.0
  %370 = vmatprep.subr.mxu0 0.0
  %371 = vmatpush1.msra.mxu0 0.0
  %372 = vmatprep.subr.mxu0 0.0
  %373 = vmatpush1.msra.mxu0 0.0
  %374 = vmatprep.subr.mxu0 0.0
  %375 = vmatpush1.msra.mxu0 0.0
  %376 = vmatprep.subr.mxu0 0.0
  %377 = vmatpush1.msra.mxu0 0.0
  %378 = vmatprep.subr.mxu0 0.0
  %379 = vmatpush1.msra.mxu0 0.0
  %380 = vmatprep.subr.mxu0 0.0
  %381 = vmatpush1.msra.mxu0 0.0
  %382 = vmatprep.subr.mxu0 0.0
  %383 = vmatpush1.msra.mxu0 0.0
  %384 = vmatprep.subr.mxu0 0.0
  %385 = vmatpush1.msra.mxu0 0.0
  %386 = vmatprep.subr.mxu0 0.0
  %387 = vmatpush1.msra.mxu0 0.0
  %388 = vmatprep.subr.mxu0 0.0
  %389 = vmatpush1.msra.mxu0 0.0
  %390 = vmatprep.subr.mxu0 0.0
  %391 = vmatpush1.msra.mxu0 0.0
  %392 = vmatprep.subr.mxu0 0.0
  %393 = vmatpush1.msra.mxu0 0.0
  %394 = vmatprep.subr.mxu0 0.0
  %395 = vmatpush1.msra.mxu0 0.0
  %396 = vmatprep.subr.mxu0 0.0
  %397 = vmatpush1.msra.mxu0 0.0
  %398 = vmatprep.subr.mxu0 0.0
  %399 = vmatpush1.msra.mxu0 0.0
  %400 = vmatprep.subr.mxu0 0.0
  %401 = vmatpush1.msra.mxu0 0.0
  %402 = vmatprep.subr.mxu0 0.0
  %403 = vmatpush1.msra.mxu0 0.0
  %404 = vmatprep.subr.mxu0 0.0
  %405 = vmatpush1.msra.mxu0 0.0
  %406 = vmatprep.subr.mxu0 0.0
  %407 = vmatpush1.msra.mxu0 0.0
  %408 = vmatprep.subr.mxu0 0.0
  %409 = vmatpush1.msra.mxu0 0.0
  %410 = vmatprep.subr.mxu0 0.0
  %411 = vmatpush1.msra.mxu0 0.0
  %412 = vmatprep.subr.mxu0 0.0
  %413 = vmatpush1.msra.mxu0 0.0
  %414 = vmatprep.subr.mxu0 0.0
  %415 = vmatpush1.msra.mxu0 0.0
  %416 = vmatprep.subr.mxu0 0.0
  %417 = vmatpush1.msra.mxu0 0.0
  %418 = vmatprep.subr.mxu0 0.0
  %419 = vmatpush1.msra.mxu0 0.0
  %420 = vmatprep.subr.mxu0 0.0
  %421 = vmatpush1.msra.mxu0 0.0
  %422 = vmatprep.mubr.f32.mxu0 0.0
  %423 = vmatmul.mubr.f32.gmra.mrb[0].mxu0 %v353
  %v424 = vpop.f32.mrb[0].mxu0
  %v425 = vadd.f32 %v344, %v424
  %v426 = vpop.f32.mrb[0].mxu0
  %427 = vmatprep.mubr.f32.mxu0 0.0
  %428 = vmatmul.mubr.f32.gmra.mrb[0].mxu0 %v356
  %v429 = vpop.f32.mrb[0].mxu0
  %v430 = vadd.f32 %v349, %v429
  %v431 = vpop.f32.mrb[0].mxu0
  %432 = vdwg.mxu0
  %433 = vst.msk [vmem:[%s2] sm:$0xff] %vm13, %v425
  %vm434 = vcmask 10240
  %435 = vst.msk [vmem:[%s2 + $0x8] sm:$0x7] %vm434, %v430
  // Predicated region
  $region10: #{tpu_custom_call.1} parent=0 // pred_check
    _
  $region11: #{tpu_custom_call.1} parent=0 // pred_check_branch
    %437 = sbr.rel (0) target = $region13
  $region12: #{tpu_custom_call.1} parent=0 // pred_region
    _
  $region13: #{tpu_custom_call.1} parent=0 // pred_fallthru
    _
  // Predicated region
  $region14: #{tpu_custom_call.1} parent=0 // pred_check
    _
  $region15: #{tpu_custom_call.1} parent=0 // pred_check_branch
    %439 = sbr.rel (0) target = $region17
  $region16: #{tpu_custom_call.1} parent=0 // pred_region
    _
  $region17: #{tpu_custom_call.1} parent=0 // pred_fallthru
    _

</llo_original>
